<compile_context>
chip_gen: v6e
topology: v6e:2x2x1
jax: 0.10.0
libtpu: 0.0.40
codegen_flags: <defaults>
</compile_context>

<pallas_src>
import functools
import math

import jax
import jax.numpy as jnp
from jax.experimental import pallas as pl
from jax.experimental.pallas import tpu as pltpu


_VMEM_LIMIT = 48 * 1024 * 1024   # explicit scoped-VMEM cap; safe on v5e/v6e (128 MiB) and v7x (64 MiB/TC)

# FCResNet architecture constants (planes / first-block stride / dilation per layer).
_LAYER_PLANES = (64, 128, 256, 512)
_LAYER_STRIDES = (1, 2, 1, 1)
_LAYER_DILATIONS = (1, 1, 2, 4)
LAYERS = (1, 1, 1, 1)            # BasicBlocks per layer for this small test instantiation


def _divisor_tile(n, cap=8):
    """Largest divisor of n that is <= cap (output row-tile height)."""
    for t in range(min(n, cap), 0, -1):
        if n % t == 0:
            return t
    return 1


# ---------------------------------------------------------------------------
# Convolution: dense (stride-1) KHxKW conv with dilation on a pre-padded NHWC
# image.  One grid step = (image n, output-row tile t): build im2col tile in
# VMEM scratch, one deep-K matmul, lane-dense output store.
# ---------------------------------------------------------------------------
def _conv_kernel(x_ref, w_ref, o_ref, col_ref, *, KH, KW, dil, TH, W_out):
    # x_ref  : (1, H_pad, W_pad, Cin)   whole padded image (fetched once per n)
    # w_ref  : (KH*KW*Cin, Cout)
    # o_ref  : (1, TH, W_out, Cout)
    # col_ref: VMEM scratch (TH, W_out, KH*KW*Cin)
    t = pl.program_id(1)
    r0 = t * TH
    Cin = x_ref.shape[3]
    Cout = o_ref.shape[3]
    K = KH * KW * Cin

    if KH == 1 and KW == 1:
        # 1x1 conv: plain channel matmul, no im2col needed.
        lhs = x_ref[0, pl.ds(r0, TH), 0:W_out, :].reshape(TH * W_out, Cin)
    else:
        for kh in range(KH):
            for kw in range(KW):
                tap = kh * KW + kw
                col_ref[:, :, tap * Cin:(tap + 1) * Cin] = x_ref[
                    0, pl.ds(r0 + kh * dil, TH), kw * dil:kw * dil + W_out, :]
        lhs = col_ref[...].reshape(TH * W_out, K)

    acc = jnp.dot(lhs, w_ref[...], preferred_element_type=jnp.float32)
    o_ref[0] = acc.reshape(TH, W_out, Cout).astype(o_ref.dtype)


@functools.lru_cache(maxsize=None)
def _build_conv(N, Hp, Wp, Cin, Cout, KH, KW, dil):
    H_out = Hp - dil * (KH - 1)
    W_out = Wp - dil * (KW - 1)
    TH = _divisor_tile(H_out)
    K = KH * KW * Cin
    kernel = functools.partial(_conv_kernel, KH=KH, KW=KW, dil=dil,
                               TH=TH, W_out=W_out)
    call = pl.pallas_call(
        kernel,
        out_shape=jax.ShapeDtypeStruct((N, H_out, W_out, Cout), jnp.float32),
        grid=(N, H_out // TH),
        in_specs=[
            pl.BlockSpec((1, Hp, Wp, Cin), lambda n, t: (n, 0, 0, 0)),
            pl.BlockSpec((K, Cout), lambda n, t: (0, 0)),
        ],
        out_specs=pl.BlockSpec((1, TH, W_out, Cout), lambda n, t: (n, t, 0, 0)),
        scratch_shapes=[pltpu.VMEM((TH, W_out, K), jnp.float32)],
        compiler_params=pltpu.CompilerParams(
            dimension_semantics=("parallel", "parallel"),
            vmem_limit_bytes=_VMEM_LIMIT),
    )
    return jax.jit(call)


def conv2d_nhwc(x, w, *, stride=1, dilation=1, padding=0):
    """nn.Conv2d (no bias) on NHWC input; w is (KH, KW, Cin, Cout) (HWIO)."""
    N, H, W, Cin = x.shape
    KH, KW, _, Cout = w.shape
    if padding:
        x = jnp.pad(x, ((0, 0), (padding, padding), (padding, padding), (0, 0)))
        # TODO(synk): fold the 1-pixel halo into the kernel (masked edge taps /
        # manual DMA) to avoid this extra HBM round trip per conv.
    Hp, Wp = H + 2 * padding, W + 2 * padding
    w2 = w.reshape(KH * KW * Cin, Cout)
    out = _build_conv(N, Hp, Wp, Cin, Cout, KH, KW, dilation)(x, w2)
    if stride > 1:
        # TODO(synk): stride is handled by dense compute + subsample (correct,
        # 4x extra MACs on the two stride-2 convs); an in-kernel strided
        # im2col gather would remove the waste.
        out = out[:, ::stride, ::stride, :]
    return out


# ---------------------------------------------------------------------------
# MaxPool 3x3, stride 2, padding 1 (dense stride-1 max + subsample; zero
# padding == -inf padding because the input is post-ReLU, i.e. >= 0).
# ---------------------------------------------------------------------------
def _maxpool_kernel(x_ref, o_ref, *, TH, W_out):
    t = pl.program_id(1)
    r0 = t * TH
    m = x_ref[0, pl.ds(r0, TH), 0:W_out, :]
    for kh in range(3):
        for kw in range(3):
            if kh == 0 and kw == 0:
                continue
            m = jnp.maximum(m, x_ref[0, pl.ds(r0 + kh, TH), kw:kw + W_out, :])
    o_ref[0] = m


@functools.lru_cache(maxsize=None)
def _build_maxpool(N, H, W, C):
    TH = _divisor_tile(H)
    kernel = functools.partial(_maxpool_kernel, TH=TH, W_out=W)
    call = pl.pallas_call(
        kernel,
        out_shape=jax.ShapeDtypeStruct((N, H, W, C), jnp.float32),
        grid=(N, H // TH),
        in_specs=[pl.BlockSpec((1, H + 2, W + 2, C), lambda n, t: (n, 0, 0, 0))],
        out_specs=pl.BlockSpec((1, TH, W, C), lambda n, t: (n, t, 0, 0)),
        compiler_params=pltpu.CompilerParams(
            dimension_semantics=("parallel", "parallel"),
            vmem_limit_bytes=_VMEM_LIMIT),
    )
    return jax.jit(call)


def maxpool_3x3_s2_p1(x):
    N, H, W, C = x.shape
    xp = jnp.pad(x, ((0, 0), (1, 1), (1, 1), (0, 0)))
    dense = _build_maxpool(N, H, W, C)(xp)
    return dense[:, ::2, ::2, :]


# ---------------------------------------------------------------------------
# BatchNorm (training-mode batch stats), split into:
#   (1) row-tiled per-channel sum / sum-of-squares reduction (resident (1, C)
#       accumulators across an "arbitrary" grid axis),
#   (2) tiny finalize in plain JAX (mean / biased var -> scale, shift),
#   (3) row-tiled normalize (+ residual) (+ ReLU) apply kernel.
# ---------------------------------------------------------------------------
def _bn_stats_kernel(x_ref, sum_ref, ssq_ref, *, R, TILE_R):
    i = pl.program_id(0)

    @pl.when(i == 0)
    def _():
        sum_ref[...] = jnp.zeros_like(sum_ref)
        ssq_ref[...] = jnp.zeros_like(ssq_ref)

    x = x_ref[...]
    # Mask rows of the (possibly padded) last tile so they do not pollute stats.
    row = jax.lax.broadcasted_iota(jnp.int32, x.shape, 0) + i * TILE_R
    x = jnp.where(row < R, x, 0.0)
    sum_ref[...] += jnp.sum(x, axis=0, keepdims=True)
    ssq_ref[...] += jnp.sum(x * x, axis=0, keepdims=True)


@functools.lru_cache(maxsize=None)
def _build_bn_stats(R, C):
    TILE_R = min(R, 512)          # either the full dim or a multiple of 8
    kernel = functools.partial(_bn_stats_kernel, R=R, TILE_R=TILE_R)
    call = pl.pallas_call(
        kernel,
        out_shape=(jax.ShapeDtypeStruct((1, C), jnp.float32),
                   jax.ShapeDtypeStruct((1, C), jnp.float32)),
        grid=(pl.cdiv(R, TILE_R),),
        in_specs=[pl.BlockSpec((TILE_R, C), lambda i: (i, 0))],
        out_specs=(pl.BlockSpec((1, C), lambda i: (0, 0)),
                   pl.BlockSpec((1, C), lambda i: (0, 0))),
        compiler_params=pltpu.CompilerParams(
            dimension_semantics=("arbitrary",),
            vmem_limit_bytes=_VMEM_LIMIT),
    )
    return jax.jit(call)


def _bn_apply_kernel(x_ref, scale_ref, shift_ref, o_ref, *, relu):
    y = x_ref[...] * scale_ref[...] + shift_ref[...]
    if relu:
        y = jnp.maximum(y, 0.0)
    o_ref[...] = y


def _bn_apply_res_kernel(x_ref, res_ref, scale_ref, shift_ref, o_ref):
    y = x_ref[...] * scale_ref[...] + shift_ref[...] + res_ref[...]
    o_ref[...] = jnp.maximum(y, 0.0)


@functools.lru_cache(maxsize=None)
def _build_bn_apply(R, C, relu, with_residual):
    TILE_R = min(R, 1024)
    row_spec = pl.BlockSpec((TILE_R, C), lambda i: (i, 0))
    vec_spec = pl.BlockSpec((1, C), lambda i: (0, 0))
    if with_residual:
        kernel = _bn_apply_res_kernel
        in_specs = [row_spec, row_spec, vec_spec, vec_spec]
    else:
        kernel = functools.partial(_bn_apply_kernel, relu=relu)
        in_specs = [row_spec, vec_spec, vec_spec]
    call = pl.pallas_call(
        kernel,
        out_shape=jax.ShapeDtypeStruct((R, C), jnp.float32),
        grid=(pl.cdiv(R, TILE_R),),
        in_specs=in_specs,
        out_specs=row_spec,
        compiler_params=pltpu.CompilerParams(
            dimension_semantics=("parallel",),
            vmem_limit_bytes=_VMEM_LIMIT),
    )
    return jax.jit(call)


def batchnorm2d(x, gamma, beta, *, relu, residual=None, eps=1e-5):
    """Training-mode BatchNorm2d, optionally fused with residual add + ReLU."""
    N, H, W, C = x.shape
    R = N * H * W
    x2d = x.reshape(R, C)
    s, ssq = _build_bn_stats(R, C)(x2d)
    mean = s / R
    var = jnp.maximum(ssq / R - mean * mean, 0.0)   # biased variance
    inv = jax.lax.rsqrt(var + eps)
    scale = gamma * inv
    shift = beta - mean * scale
    # TODO(synk): running_mean / running_var buffer updates (momentum) are not
    # materialized; they do not affect the forward output.
    if residual is not None:
        y2d = _build_bn_apply(R, C, True, True)(x2d, residual.reshape(R, C),
                                                scale, shift)
    else:
        y2d = _build_bn_apply(R, C, relu, False)(x2d, scale, shift)
    return y2d.reshape(N, H, W, C)


# ---------------------------------------------------------------------------
# BasicBlock and FCResNet forward.
# ---------------------------------------------------------------------------
def basic_block(x, p, *, stride, dilation):
    out = conv2d_nhwc(x, p["conv1_w"], stride=stride, dilation=dilation,
                      padding=dilation)
    out = batchnorm2d(out, p["bn1_g"], p["bn1_b"], relu=True)
    out = conv2d_nhwc(out, p["conv2_w"], stride=1, dilation=dilation,
                      padding=dilation)
    if "ds_conv_w" in p:
        res = conv2d_nhwc(x, p["ds_conv_w"], stride=stride, dilation=1, padding=0)
        res = batchnorm2d(res, p["ds_bn_g"], p["ds_bn_b"], relu=False)
    else:
        res = x
    return batchnorm2d(out, p["bn2_g"], p["bn2_b"], relu=True, residual=res)


def fc_resnet_forward(x_nchw, params, layers=LAYERS):
    """FCResNet.forward.  Input / output are NCHW like the PyTorch module."""
    x = jnp.transpose(x_nchw, (0, 2, 3, 1)).astype(jnp.float32)   # NCHW -> NHWC
    x = conv2d_nhwc(x, params["conv1_w"], stride=2, dilation=1, padding=3)
    x = batchnorm2d(x, params["bn1_g"], params["bn1_b"], relu=True)
    x = maxpool_3x3_s2_p1(x)
    for li, nblk in enumerate(layers):
        for bi in range(nblk):
            blk = params["layers"][li][bi]
            s = _LAYER_STRIDES[li] if bi == 0 else 1
            d = _LAYER_DILATIONS[li]
            x = basic_block(x, blk, stride=s, dilation=d)
    return jnp.transpose(x, (0, 3, 1, 2))                         # NHWC -> NCHW


# ---------------------------------------------------------------------------
# Parameter init (matches the PyTorch init: conv ~ N(0, sqrt(2/(k*k*Cout))),
# BN gamma=1, beta=0).  Weights stored as (KH, KW, Cin, Cout).
# ---------------------------------------------------------------------------
def _conv_weight(key, kh, kw, cin, cout):
    std = math.sqrt(2.0 / (kh * kw * cout))
    return std * jax.random.normal(key, (kh, kw, cin, cout), jnp.float32)


def _bn_params(c):
    return jnp.ones((1, c), jnp.float32), jnp.zeros((1, c), jnp.float32)


def init_fc_resnet_params(key, layers=LAYERS):
    keys = list(jax.random.split(key, 64))
    params = {"conv1_w": _conv_weight(keys.pop(), 7, 7, 3, 64)}
    params["bn1_g"], params["bn1_b"] = _bn_params(64)
    inplanes = 64
    all_layers = []
    for planes, stride, dil, nblk in zip(_LAYER_PLANES, _LAYER_STRIDES,
                                         _LAYER_DILATIONS, layers):
        blocks = []
        for bi in range(nblk):
            cin = inplanes if bi == 0 else planes
            blk = {"conv1_w": _conv_weight(keys.pop(), 3, 3, cin, planes),
                   "conv2_w": _conv_weight(keys.pop(), 3, 3, planes, planes)}
            blk["bn1_g"], blk["bn1_b"] = _bn_params(planes)
            blk["bn2_g"], blk["bn2_b"] = _bn_params(planes)
            if bi == 0 and (stride != 1 or dil != 1 or inplanes != planes):
                blk["ds_conv_w"] = _conv_weight(keys.pop(), 1, 1, inplanes, planes)
                blk["ds_bn_g"], blk["ds_bn_b"] = _bn_params(planes)
            blocks.append(blk)
        inplanes = planes
        all_layers.append(blocks)
    params["layers"] = all_layers
    return params


# ---------------------------------------------------------------------------
# Small numeric self-check of the conv kernel against XLA's reference conv.
# ---------------------------------------------------------------------------
def _conv_self_check():
    k1, k2 = jax.random.split(jax.random.PRNGKey(42))
    x = jax.random.normal(k1, (1, 8, 8, 16), jnp.float32)
    w = 0.1 * jax.random.normal(k2, (3, 3, 16, 32), jnp.float32)
    for stride, dil in ((1, 1), (2, 1), (1, 2)):
        pad = dil
        got = conv2d_nhwc(x, w, stride=stride, dilation=dil, padding=pad)
        ref = jax.lax.conv_general_dilated(
            x, w, window_strides=(stride, stride),
            padding=[(pad, pad), (pad, pad)],
            rhs_dilation=(dil, dil),
            dimension_numbers=("NHWC", "HWIO", "NHWC"),
            precision=jax.lax.Precision.HIGHEST)
        err = float(jnp.max(jnp.abs(got - ref)))
        tol = 1e-2 * float(jnp.max(jnp.abs(ref))) + 1e-4
        assert err <= tol, ("conv mismatch", stride, dil, err, tol)


if __name__ == "__main__":
    key = jax.random.PRNGKey(0)
    kx, kp = jax.random.split(key)

    _conv_self_check()

    N, Cin, H, W = 2, 3, 32, 32                    # NCHW, like the PyTorch module
    x = jax.random.normal(kx, (N, Cin, H, W), jnp.float32)
    params = init_fc_resnet_params(kp)

    y = fc_resnet_forward(x, params)
    y = jax.block_until_ready(y)

    # stem: /2 (conv1) /2 (maxpool); layer2: /2; layers 3/4 dilated, keep res.
    assert y.shape == (N, 512, H // 8, W // 8), y.shape
    assert bool(jnp.all(jnp.isfinite(y)))
    assert bool(jnp.all(y >= 0.0))                 # final ReLU
    print("KERNEL_OK")
</pallas_src>

<mosaic_0001>
module attributes {stable_mosaic.version = 11 : i64} {
  func.func @_conv_kernel(%arg0: i32, %arg1: i32, %arg2: memref<1x10x10x16xf32, #tpu.memory_space<vmem>>, %arg3: memref<144x32xf32, #tpu.memory_space<vmem>>, %arg4: memref<1x8x8x32xf32, #tpu.memory_space<vmem>>, %arg5: memref<8x8x144xf32, #tpu.memory_space<vmem>>) attributes {dimension_semantics = [#tpu.dimension_semantics<parallel>, #tpu.dimension_semantics<parallel>], iteration_bounds = array<i64: 1, 1>, scalar_prefetch = 0 : i64, scratch_operands = 1 : i64, tpu.core_type = #tpu.core_type<tc>, window_params = [{transform_indices = @transform_0, window_bounds = array<i64: 1, 10, 10, 16>}, {pipeline_mode = #tpu.pipeline_mode<synchronous>, transform_indices = @transform_1, window_bounds = array<i64: 144, 32>}, {transform_indices = @transform_2, window_bounds = array<i64: 1, 8, 8, 32>}]} {
    %c8_i32 = arith.constant 8 : i32
    %0 = arith.muli %arg1, %c8_i32 : i32
    %c0_i32 = arith.constant 0 : i32
    %1 = arith.addi %0, %c0_i32 : i32
    %c0 = arith.constant 0 : index
    %2 = arith.index_cast %1 : i32 to index
    %c0_0 = arith.constant 0 : index
    %c0_1 = arith.constant 0 : index
    %3 = vector.load %arg2[%c0, %2, %c0_0, %c0_1] : memref<1x10x10x16xf32, #tpu.memory_space<vmem>>, vector<1x8x8x16xf32>
    %4 = vector.shape_cast %3 : vector<1x8x8x16xf32> to vector<8x8x16xf32>
    %c0_2 = arith.constant 0 : index
    %c0_3 = arith.constant 0 : index
    %c0_4 = arith.constant 0 : index
    %5 = vector.load %arg5[%c0_2, %c0_3, %c0_4] : memref<8x8x144xf32, #tpu.memory_space<vmem>>, vector<8x8x16xf32>
    tpu.vector_store %arg5[%c0_2, %c0_3, %c0_4], %4 {strides = array<i32>} : memref<8x8x144xf32, #tpu.memory_space<vmem>>, vector<8x8x16xf32>,
    %c0_i32_5 = arith.constant 0 : i32
    %6 = arith.addi %0, %c0_i32_5 : i32
    %c0_6 = arith.constant 0 : index
    %7 = arith.index_cast %6 : i32 to index
    %c1 = arith.constant 1 : index
    %c0_7 = arith.constant 0 : index
    %8 = vector.load %arg2[%c0_6, %7, %c1, %c0_7] : memref<1x10x10x16xf32, #tpu.memory_space<vmem>>, vector<1x8x8x16xf32>
    %9 = vector.shape_cast %8 : vector<1x8x8x16xf32> to vector<8x8x16xf32>
    %c0_8 = arith.constant 0 : index
    %c0_9 = arith.constant 0 : index
    %c16 = arith.constant 16 : index
    %10 = vector.load %arg5[%c0_8, %c0_9, %c16] : memref<8x8x144xf32, #tpu.memory_space<vmem>>, vector<8x8x16xf32>
    tpu.vector_store %arg5[%c0_8, %c0_9, %c16], %9 {strides = array<i32>} : memref<8x8x144xf32, #tpu.memory_space<vmem>>, vector<8x8x16xf32>,
    %c0_i32_10 = arith.constant 0 : i32
    %11 = arith.addi %0, %c0_i32_10 : i32
    %c0_11 = arith.constant 0 : index
    %12 = arith.index_cast %11 : i32 to index
    %c2 = arith.constant 2 : index
    %c0_12 = arith.constant 0 : index
    %13 = vector.load %arg2[%c0_11, %12, %c2, %c0_12] : memref<1x10x10x16xf32, #tpu.memory_space<vmem>>, vector<1x8x8x16xf32>
    %14 = vector.shape_cast %13 : vector<1x8x8x16xf32> to vector<8x8x16xf32>
    %c0_13 = arith.constant 0 : index
    %c0_14 = arith.constant 0 : index
    %c32 = arith.constant 32 : index
    %15 = vector.load %arg5[%c0_13, %c0_14, %c32] : memref<8x8x144xf32, #tpu.memory_space<vmem>>, vector<8x8x16xf32>
    tpu.vector_store %arg5[%c0_13, %c0_14, %c32], %14 {strides = array<i32>} : memref<8x8x144xf32, #tpu.memory_space<vmem>>, vector<8x8x16xf32>,
    %c1_i32 = arith.constant 1 : i32
    %16 = arith.addi %0, %c1_i32 : i32
    %c0_15 = arith.constant 0 : index
    %17 = arith.index_cast %16 : i32 to index
    %c0_16 = arith.constant 0 : index
    %c0_17 = arith.constant 0 : index
    %18 = vector.load %arg2[%c0_15, %17, %c0_16, %c0_17] : memref<1x10x10x16xf32, #tpu.memory_space<vmem>>, vector<1x8x8x16xf32>
    %19 = vector.shape_cast %18 : vector<1x8x8x16xf32> to vector<8x8x16xf32>
    %c0_18 = arith.constant 0 : index
    %c0_19 = arith.constant 0 : index
    %c48 = arith.constant 48 : index
    %20 = vector.load %arg5[%c0_18, %c0_19, %c48] : memref<8x8x144xf32, #tpu.memory_space<vmem>>, vector<8x8x16xf32>
    tpu.vector_store %arg5[%c0_18, %c0_19, %c48], %19 {strides = array<i32>} : memref<8x8x144xf32, #tpu.memory_space<vmem>>, vector<8x8x16xf32>,
    %c1_i32_20 = arith.constant 1 : i32
    %21 = arith.addi %0, %c1_i32_20 : i32
    %c0_21 = arith.constant 0 : index
    %22 = arith.index_cast %21 : i32 to index
    %c1_22 = arith.constant 1 : index
    %c0_23 = arith.constant 0 : index
    %23 = vector.load %arg2[%c0_21, %22, %c1_22, %c0_23] : memref<1x10x10x16xf32, #tpu.memory_space<vmem>>, vector<1x8x8x16xf32>
    %24 = vector.shape_cast %23 : vector<1x8x8x16xf32> to vector<8x8x16xf32>
    %c0_24 = arith.constant 0 : index
    %c0_25 = arith.constant 0 : index
    %c64 = arith.constant 64 : index
    %25 = vector.load %arg5[%c0_24, %c0_25, %c64] : memref<8x8x144xf32, #tpu.memory_space<vmem>>, vector<8x8x16xf32>
    tpu.vector_store %arg5[%c0_24, %c0_25, %c64], %24 {strides = array<i32>} : memref<8x8x144xf32, #tpu.memory_space<vmem>>, vector<8x8x16xf32>,
    %c1_i32_26 = arith.constant 1 : i32
    %26 = arith.addi %0, %c1_i32_26 : i32
    %c0_27 = arith.constant 0 : index
    %27 = arith.index_cast %26 : i32 to index
    %c2_28 = arith.constant 2 : index
    %c0_29 = arith.constant 0 : index
    %28 = vector.load %arg2[%c0_27, %27, %c2_28, %c0_29] : memref<1x10x10x16xf32, #tpu.memory_space<vmem>>, vector<1x8x8x16xf32>
    %29 = vector.shape_cast %28 : vector<1x8x8x16xf32> to vector<8x8x16xf32>
    %c0_30 = arith.constant 0 : index
    %c0_31 = arith.constant 0 : index
    %c80 = arith.constant 80 : index
    %30 = vector.load %arg5[%c0_30, %c0_31, %c80] : memref<8x8x144xf32, #tpu.memory_space<vmem>>, vector<8x8x16xf32>
    tpu.vector_store %arg5[%c0_30, %c0_31, %c80], %29 {strides = array<i32>} : memref<8x8x144xf32, #tpu.memory_space<vmem>>, vector<8x8x16xf32>,
    %c2_i32 = arith.constant 2 : i32
    %31 = arith.addi %0, %c2_i32 : i32
    %c0_32 = arith.constant 0 : index
    %32 = arith.index_cast %31 : i32 to index
    %c0_33 = arith.constant 0 : index
    %c0_34 = arith.constant 0 : index
    %33 = vector.load %arg2[%c0_32, %32, %c0_33, %c0_34] : memref<1x10x10x16xf32, #tpu.memory_space<vmem>>, vector<1x8x8x16xf32>
    %34 = vector.shape_cast %33 : vector<1x8x8x16xf32> to vector<8x8x16xf32>
    %c0_35 = arith.constant 0 : index
    %c0_36 = arith.constant 0 : index
    %c96 = arith.constant 96 : index
    %35 = vector.load %arg5[%c0_35, %c0_36, %c96] : memref<8x8x144xf32, #tpu.memory_space<vmem>>, vector<8x8x16xf32>
    tpu.vector_store %arg5[%c0_35, %c0_36, %c96], %34 {strides = array<i32>} : memref<8x8x144xf32, #tpu.memory_space<vmem>>, vector<8x8x16xf32>,
    %c2_i32_37 = arith.constant 2 : i32
    %36 = arith.addi %0, %c2_i32_37 : i32
    %c0_38 = arith.constant 0 : index
    %37 = arith.index_cast %36 : i32 to index
    %c1_39 = arith.constant 1 : index
    %c0_40 = arith.constant 0 : index
    %38 = vector.load %arg2[%c0_38, %37, %c1_39, %c0_40] : memref<1x10x10x16xf32, #tpu.memory_space<vmem>>, vector<1x8x8x16xf32>
    %39 = vector.shape_cast %38 : vector<1x8x8x16xf32> to vector<8x8x16xf32>
    %c0_41 = arith.constant 0 : index
    %c0_42 = arith.constant 0 : index
    %c112 = arith.constant 112 : index
    %40 = vector.load %arg5[%c0_41, %c0_42, %c112] : memref<8x8x144xf32, #tpu.memory_space<vmem>>, vector<8x8x16xf32>
    tpu.vector_store %arg5[%c0_41, %c0_42, %c112], %39 {strides = array<i32>} : memref<8x8x144xf32, #tpu.memory_space<vmem>>, vector<8x8x16xf32>,
    %c2_i32_43 = arith.constant 2 : i32
    %41 = arith.addi %0, %c2_i32_43 : i32
    %c0_44 = arith.constant 0 : index
    %42 = arith.index_cast %41 : i32 to index
    %c2_45 = arith.constant 2 : index
    %c0_46 = arith.constant 0 : index
    %43 = vector.load %arg2[%c0_44, %42, %c2_45, %c0_46] : memref<1x10x10x16xf32, #tpu.memory_space<vmem>>, vector<1x8x8x16xf32>
    %44 = vector.shape_cast %43 : vector<1x8x8x16xf32> to vector<8x8x16xf32>
    %c0_47 = arith.constant 0 : index
    %c0_48 = arith.constant 0 : index
    %c128 = arith.constant 128 : index
    %45 = vector.load %arg5[%c0_47, %c0_48, %c128] : memref<8x8x144xf32, #tpu.memory_space<vmem>>, vector<8x8x16xf32>
    tpu.vector_store %arg5[%c0_47, %c0_48, %c128], %44 {strides = array<i32>} : memref<8x8x144xf32, #tpu.memory_space<vmem>>, vector<8x8x16xf32>,
    %c0_49 = arith.constant 0 : index
    %c0_50 = arith.constant 0 : index
    %c0_51 = arith.constant 0 : index
    %46 = vector.load %arg5[%c0_49, %c0_50, %c0_51] : memref<8x8x144xf32, #tpu.memory_space<vmem>>, vector<8x8x144xf32>
    %47 = vector.shape_cast %46 : vector<8x8x144xf32> to vector<64x144xf32>
    %c0_52 = arith.constant 0 : index
    %c0_53 = arith.constant 0 : index
    %48 = vector.load %arg3[%c0_52, %c0_53] : memref<144x32xf32, #tpu.memory_space<vmem>>, vector<144x32xf32>
    %cst = arith.constant dense<0.000000e+00> : vector<64x32xf32>
    %49 = tpu.matmul %47, %48, %cst {dimension_numbers = #tpu.dot_dimension_numbers<[1], [0], [0], [1], [0, 0, 1, 1], [], []>} : vector<64x144xf32>, vector<144x32xf32>, vector<64x32xf32> -> vector<64x32xf32>
    %50 = vector.shape_cast %49 : vector<64x32xf32> to vector<8x8x32xf32>
    %c0_54 = arith.constant 0 : index
    %c0_55 = arith.constant 0 : index
    %c0_56 = arith.constant 0 : index
    %c0_57 = arith.constant 0 : index
    %51 = vector.load %arg4[%c0_54, %c0_55, %c0_56, %c0_57] : memref<1x8x8x32xf32, #tpu.memory_space<vmem>>, vector<1x8x8x32xf32>
    %52 = vector.shape_cast %51 : vector<1x8x8x32xf32> to vector<8x8x32xf32>
    %53 = vector.shape_cast %50 : vector<8x8x32xf32> to vector<1x8x8x32xf32>
    tpu.vector_store %arg4[%c0_54, %c0_55, %c0_56, %c0_57], %53 {strides = array<i32>} : memref<1x8x8x32xf32, #tpu.memory_space<vmem>>, vector<1x8x8x32xf32>,
    return
  }
  func.func @transform_0(%arg0: i32, %arg1: i32) -> (i32, i32, i32, i32) {
    %c0_i32 = arith.constant 0 : i32
    %c0_i32_0 = arith.constant 0 : i32
    %c0_i32_1 = arith.constant 0 : i32
    %c0_i32_2 = arith.constant 0 : i32
    return %arg0, %c0_i32, %c0_i32_0, %c0_i32_1 : i32, i32, i32, i32
  }
  func.func @transform_1(%arg0: i32, %arg1: i32) -> (i32, i32) {
    %c0_i32 = arith.constant 0 : i32
    %c0_i32_0 = arith.constant 0 : i32
    %c0_i32_1 = arith.constant 0 : i32
    return %c0_i32, %c0_i32_0 : i32, i32
  }
  func.func @transform_2(%arg0: i32, %arg1: i32) -> (i32, i32, i32, i32) {
    %c0_i32 = arith.constant 0 : i32
    %c0_i32_0 = arith.constant 0 : i32
    %c0_i32_1 = arith.constant 0 : i32
    return %arg0, %arg1, %c0_i32, %c0_i32_0 : i32, i32, i32, i32
  }
}

</mosaic_0001>

<llo_original>
// kernel: tpu_custom_call.1
$region0: #{tpu_custom_call.1}
  #allocation0 [shape = 'u32[]', space=smem, size = 0x4, offset = 0x4, fixed_abs, tag = 'smem constant byte address 0x4 - core index']
  #allocation1 [shape = 'u32[144,128]{1,0:T(1,128)}', space=vmem, size = 0x12000, scoped, tag = 'internal scratch']
  #allocation2 [shape = 'f32[8,8,144]{2,1,0:T(8,128)}', space=vmem, size = 0x10000, scoped, tag = 'scratch operand']
  %s0 = inlined_call_operand.vmem [shape: f32[1,10,10,16], index: 0, kind: input, shape index: {}]
  %s1 = inlined_call_operand.vmem [shape: f32[144,32], index: 1, kind: input, shape index: {}]
  %s2 = inlined_call_operand.hbm [shape: f32[1,8,8,32], index: 2, kind: output, shape index: {}]
  %s3 = sld [smem:[#allocation0]]
  $region18: #{tpu_custom_call.1} parent=0
    _
  %s5 = ssub.s32 1, %s3
  %s6 = scalar_select 0, %s5, %s3
  $region1: #{tpu_custom_call.1} parent=0
    #allocation3 [shape = 'u8[32768]{0}', space=vmem, size = 0x8000, scoped, tag = 'output window, operand 0, single buffered']
    #allocation4 [shape = 's32[1]{0}', space=sflag, size = 0x4, scoped, tag = 'scoped memory for tpu_custom_call.1']
    %7 = vsyncpa [#allocation4], 0
    // Predicated region
    $region2: #{tpu_custom_call.1} parent=1 // pred_check
      _
    $region3: #{tpu_custom_call.1} parent=1 // pred_check_branch
      %9 = sbr.rel (0) target = $region5
    $region4: #{tpu_custom_call.1} parent=1 // pred_region
      _
    $region5: #{tpu_custom_call.1} parent=1 // pred_fallthru
      _
    // Predicated region
    $region6: #{tpu_custom_call.1} parent=1 // pred_check
      _
    $region7: #{tpu_custom_call.1} parent=1 // pred_check_branch
      %11 = sbr.rel (0) target = $region9
    $region8: #{tpu_custom_call.1} parent=1 // pred_region
      _
    $region9: #{tpu_custom_call.1} parent=1 // pred_fallthru
      _
    %s12 = smul.u32 0, 8
    %s13 = smul.u32 %s12, 16
    %s14 = scalar_lea.vmem %s0, %s13
    %v15 = vld [vmem:[%s14] sm:$0xff]
    %v16 = vld [vmem:[%s14 + $0x10] sm:$0xff]
    %v17 = vld [vmem:[%s14 + $0x20] sm:$0xff]
    %v18 = vld [vmem:[%s14 + $0x30] sm:$0xff]
    %v19 = vld [vmem:[%s14 + $0x40] sm:$0xff]
    %v20 = vld [vmem:[%s14 + $0x50] sm:$0xff]
    %v21 = vld [vmem:[%s14 + $0x60] sm:$0xff]
    %v22 = vld [vmem:[%s14 + $0x70] sm:$0xff]
    %vm23 = vcmask 130048
    %24 = vst.msk [vmem:[#allocation2] sm:$0xff] %vm23, %v15
    %25 = vst.msk [vmem:[#allocation2 + $0x10] sm:$0xff] %vm23, %v16
    %26 = vst.msk [vmem:[#allocation2 + $0x20] sm:$0xff] %vm23, %v17
    %27 = vst.msk [vmem:[#allocation2 + $0x30] sm:$0xff] %vm23, %v18
    %28 = vst.msk [vmem:[#allocation2 + $0x40] sm:$0xff] %vm23, %v19
    %29 = vst.msk [vmem:[#allocation2 + $0x50] sm:$0xff] %vm23, %v20
    %30 = vst.msk [vmem:[#allocation2 + $0x60] sm:$0xff] %vm23, %v21
    %31 = vst.msk [vmem:[#allocation2 + $0x70] sm:$0xff] %vm23, %v22
    %v32 = vld [vmem:[%s14 + $0x1] sm:$0xff]
    %v33 = vld [vmem:[%s14 + $0x11] sm:$0xff]
    %v34 = vld [vmem:[%s14 + $0x21] sm:$0xff]
    %v35 = vld [vmem:[%s14 + $0x31] sm:$0xff]
    %v36 = vld [vmem:[%s14 + $0x41] sm:$0xff]
    %v37 = vld [vmem:[%s14 + $0x51] sm:$0xff]
    %v38 = vld [vmem:[%s14 + $0x61] sm:$0xff]
    %v39 = vld [vmem:[%s14 + $0x71] sm:$0xff]
    %48 = vrot.lane.b32.xlu0 %v32, 16
    %v49 = vpop.permute.xlu0 %48
    %50 = vrot.lane.b32.xlu0 %v33, 16
    %v51 = vpop.permute.xlu0 %50
    %52 = vrot.lane.b32.xlu0 %v34, 16
    %v53 = vpop.permute.xlu0 %52
    %54 = vrot.lane.b32.xlu0 %v35, 16
    %v55 = vpop.permute.xlu0 %54
    %56 = vrot.lane.b32.xlu0 %v36, 16
    %v57 = vpop.permute.xlu0 %56
    %58 = vrot.lane.b32.xlu0 %v37, 16
    %v59 = vpop.permute.xlu0 %58
    %60 = vrot.lane.b32.xlu0 %v38, 16
    %v61 = vpop.permute.xlu0 %60
    %62 = vrot.lane.b32.xlu0 %v39, 16
    %v63 = vpop.permute.xlu0 %62
    %vm72 = vcmask 261248
    %73 = vst.msk [vmem:[#allocation2] sm:$0xff] %vm72, %v49
    %74 = vst.msk [vmem:[#allocation2 + $0x10] sm:$0xff] %vm72, %v51
    %75 = vst.msk [vmem:[#allocation2 + $0x20] sm:$0xff] %vm72, %v53
    %76 = vst.msk [vmem:[#allocation2 + $0x30] sm:$0xff] %vm72, %v55
    %77 = vst.msk [vmem:[#allocation2 + $0x40] sm:$0xff] %vm72, %v57
    %78 = vst.msk [vmem:[#allocation2 + $0x50] sm:$0xff] %vm72, %v59
    %79 = vst.msk [vmem:[#allocation2 + $0x60] sm:$0xff] %vm72, %v61
    %80 = vst.msk [vmem:[#allocation2 + $0x70] sm:$0xff] %vm72, %v63
    %v81 = vld [vmem:[%s14 + $0x2] sm:$0xff]
    %v82 = vld [vmem:[%s14 + $0x12] sm:$0xff]
    %v83 = vld [vmem:[%s14 + $0x22] sm:$0xff]
    %v84 = vld [vmem:[%s14 + $0x32] sm:$0xff]
    %v85 = vld [vmem:[%s14 + $0x42] sm:$0xff]
    %v86 = vld [vmem:[%s14 + $0x52] sm:$0xff]
    %v87 = vld [vmem:[%s14 + $0x62] sm:$0xff]
    %v88 = vld [vmem:[%s14 + $0x72] sm:$0xff]
    %97 = vrot.lane.b32.xlu0 %v81, 32
    %v98 = vpop.permute.xlu0 %97
    %99 = vrot.lane.b32.xlu0 %v82, 32
    %v100 = vpop.permute.xlu0 %99
    %101 = vrot.lane.b32.xlu0 %v83, 32
    %v102 = vpop.permute.xlu0 %101
    %103 = vrot.lane.b32.xlu0 %v84, 32
    %v104 = vpop.permute.xlu0 %103
    %105 = vrot.lane.b32.xlu0 %v85, 32
    %v106 = vpop.permute.xlu0 %105
    %107 = vrot.lane.b32.xlu0 %v86, 32
    %v108 = vpop.permute.xlu0 %107
    %109 = vrot.lane.b32.xlu0 %v87, 32
    %v110 = vpop.permute.xlu0 %109
    %111 = vrot.lane.b32.xlu0 %v88, 32
    %v112 = vpop.permute.xlu0 %111
    %vm121 = vcmask 392448
    %122 = vst.msk [vmem:[#allocation2] sm:$0xff] %vm121, %v98
    %123 = vst.msk [vmem:[#allocation2 + $0x10] sm:$0xff] %vm121, %v100
    %124 = vst.msk [vmem:[#allocation2 + $0x20] sm:$0xff] %vm121, %v102
    %125 = vst.msk [vmem:[#allocation2 + $0x30] sm:$0xff] %vm121, %v104
    %126 = vst.msk [vmem:[#allocation2 + $0x40] sm:$0xff] %vm121, %v106
    %127 = vst.msk [vmem:[#allocation2 + $0x50] sm:$0xff] %vm121, %v108
    %128 = vst.msk [vmem:[#allocation2 + $0x60] sm:$0xff] %vm121, %v110
    %129 = vst.msk [vmem:[#allocation2 + $0x70] sm:$0xff] %vm121, %v112
    %s130 = sadd.s32 %s12, 1
    %s131 = smul.u32 %s130, 16
    %s132 = scalar_lea.vmem %s0, %s131
    %v133 = vld [vmem:[%s132] sm:$0xff]
    %v134 = vld [vmem:[%s132 + $0x10] sm:$0xff]
    %v135 = vld [vmem:[%s132 + $0x20] sm:$0xff]
    %v136 = vld [vmem:[%s132 + $0x30] sm:$0xff]
    %v137 = vld [vmem:[%s132 + $0x40] sm:$0xff]
    %v138 = vld [vmem:[%s132 + $0x50] sm:$0xff]
    %v139 = vld [vmem:[%s132 + $0x60] sm:$0xff]
    %v140 = vld [vmem:[%s132 + $0x70] sm:$0xff]
    %149 = vrot.lane.b32.xlu0 %v133, 48
    %v150 = vpop.permute.xlu0 %149
    %151 = vrot.lane.b32.xlu0 %v134, 48
    %v152 = vpop.permute.xlu0 %151
    %153 = vrot.lane.b32.xlu0 %v135, 48
    %v154 = vpop.permute.xlu0 %153
    %155 = vrot.lane.b32.xlu0 %v136, 48
    %v156 = vpop.permute.xlu0 %155
    %157 = vrot.lane.b32.xlu0 %v137, 48
    %v158 = vpop.permute.xlu0 %157
    %159 = vrot.lane.b32.xlu0 %v138, 48
    %v160 = vpop.permute.xlu0 %159
    %161 = vrot.lane.b32.xlu0 %v139, 48
    %v162 = vpop.permute.xlu0 %161
    %163 = vrot.lane.b32.xlu0 %v140, 48
    %v164 = vpop.permute.xlu0 %163
    %vm173 = vcmask 523648
    %174 = vst.msk [vmem:[#allocation2] sm:$0xff] %vm173, %v150
    %175 = vst.msk [vmem:[#allocation2 + $0x10] sm:$0xff] %vm173, %v152
    %176 = vst.msk [vmem:[#allocation2 + $0x20] sm:$0xff] %vm173, %v154
    %177 = vst.msk [vmem:[#allocation2 + $0x30] sm:$0xff] %vm173, %v156
    %178 = vst.msk [vmem:[#allocation2 + $0x40] sm:$0xff] %vm173, %v158
    %179 = vst.msk [vmem:[#allocation2 + $0x50] sm:$0xff] %vm173, %v160
    %180 = vst.msk [vmem:[#allocation2 + $0x60] sm:$0xff] %vm173, %v162
    %181 = vst.msk [vmem:[#allocation2 + $0x70] sm:$0xff] %vm173, %v164
    %v182 = vld [vmem:[%s132 + $0x1] sm:$0xff]
    %v183 = vld [vmem:[%s132 + $0x11] sm:$0xff]
    %v184 = vld [vmem:[%s132 + $0x21] sm:$0xff]
    %v185 = vld [vmem:[%s132 + $0x31] sm:$0xff]
    %v186 = vld [vmem:[%s132 + $0x41] sm:$0xff]
    %v187 = vld [vmem:[%s132 + $0x51] sm:$0xff]
    %v188 = vld [vmem:[%s132 + $0x61] sm:$0xff]
    %v189 = vld [vmem:[%s132 + $0x71] sm:$0xff]
    %198 = vrot.lane.b32.xlu0 %v182, 64
    %v199 = vpop.permute.xlu0 %198
    %200 = vrot.lane.b32.xlu0 %v183, 64
    %v201 = vpop.permute.xlu0 %200
    %202 = vrot.lane.b32.xlu0 %v184, 64
    %v203 = vpop.permute.xlu0 %202
    %204 = vrot.lane.b32.xlu0 %v185, 64
    %v205 = vpop.permute.xlu0 %204
    %206 = vrot.lane.b32.xlu0 %v186, 64
    %v207 = vpop.permute.xlu0 %206
    %208 = vrot.lane.b32.xlu0 %v187, 64
    %v209 = vpop.permute.xlu0 %208
    %210 = vrot.lane.b32.xlu0 %v188, 64
    %v211 = vpop.permute.xlu0 %210
    %212 = vrot.lane.b32.xlu0 %v189, 64
    %v213 = vpop.permute.xlu0 %212
    %vm222 = vcmask 654848
    %223 = vst.msk [vmem:[#allocation2] sm:$0xff] %vm222, %v199
    %224 = vst.msk [vmem:[#allocation2 + $0x10] sm:$0xff] %vm222, %v201
    %225 = vst.msk [vmem:[#allocation2 + $0x20] sm:$0xff] %vm222, %v203
    %226 = vst.msk [vmem:[#allocation2 + $0x30] sm:$0xff] %vm222, %v205
    %227 = vst.msk [vmem:[#allocation2 + $0x40] sm:$0xff] %vm222, %v207
    %228 = vst.msk [vmem:[#allocation2 + $0x50] sm:$0xff] %vm222, %v209
    %229 = vst.msk [vmem:[#allocation2 + $0x60] sm:$0xff] %vm222, %v211
    %230 = vst.msk [vmem:[#allocation2 + $0x70] sm:$0xff] %vm222, %v213
    %v231 = vld [vmem:[%s132 + $0x2] sm:$0xff]
    %v232 = vld [vmem:[%s132 + $0x12] sm:$0xff]
    %v233 = vld [vmem:[%s132 + $0x22] sm:$0xff]
    %v234 = vld [vmem:[%s132 + $0x32] sm:$0xff]
    %v235 = vld [vmem:[%s132 + $0x42] sm:$0xff]
    %v236 = vld [vmem:[%s132 + $0x52] sm:$0xff]
    %v237 = vld [vmem:[%s132 + $0x62] sm:$0xff]
    %v238 = vld [vmem:[%s132 + $0x72] sm:$0xff]
    %247 = vrot.lane.b32.xlu0 %v231, 80
    %v248 = vpop.permute.xlu0 %247
    %249 = vrot.lane.b32.xlu0 %v232, 80
    %v250 = vpop.permute.xlu0 %249
    %251 = vrot.lane.b32.xlu0 %v233, 80
    %v252 = vpop.permute.xlu0 %251
    %253 = vrot.lane.b32.xlu0 %v234, 80
    %v254 = vpop.permute.xlu0 %253
    %255 = vrot.lane.b32.xlu0 %v235, 80
    %v256 = vpop.permute.xlu0 %255
    %257 = vrot.lane.b32.xlu0 %v236, 80
    %v258 = vpop.permute.xlu0 %257
    %259 = vrot.lane.b32.xlu0 %v237, 80
    %v260 = vpop.permute.xlu0 %259
    %261 = vrot.lane.b32.xlu0 %v238, 80
    %v262 = vpop.permute.xlu0 %261
    %vm271 = vcmask 786048
    %272 = vst.msk [vmem:[#allocation2] sm:$0xff] %vm271, %v248
    %273 = vst.msk [vmem:[#allocation2 + $0x10] sm:$0xff] %vm271, %v250
    %274 = vst.msk [vmem:[#allocation2 + $0x20] sm:$0xff] %vm271, %v252
    %275 = vst.msk [vmem:[#allocation2 + $0x30] sm:$0xff] %vm271, %v254
    %276 = vst.msk [vmem:[#allocation2 + $0x40] sm:$0xff] %vm271, %v256
    %277 = vst.msk [vmem:[#allocation2 + $0x50] sm:$0xff] %vm271, %v258
    %278 = vst.msk [vmem:[#allocation2 + $0x60] sm:$0xff] %vm271, %v260
    %279 = vst.msk [vmem:[#allocation2 + $0x70] sm:$0xff] %vm271, %v262
    %s280 = sadd.s32 %s12, 2
    %s281 = smul.u32 %s280, 16
    %s282 = scalar_lea.vmem %s0, %s281
    %v283 = vld [vmem:[%s282] sm:$0xff]
    %v284 = vld [vmem:[%s282 + $0x10] sm:$0xff]
    %v285 = vld [vmem:[%s282 + $0x20] sm:$0xff]
    %v286 = vld [vmem:[%s282 + $0x30] sm:$0xff]
    %v287 = vld [vmem:[%s282 + $0x40] sm:$0xff]
    %v288 = vld [vmem:[%s282 + $0x50] sm:$0xff]
    %v289 = vld [vmem:[%s282 + $0x60] sm:$0xff]
    %v290 = vld [vmem:[%s282 + $0x70] sm:$0xff]
    %299 = vrot.lane.b32.xlu0 %v283, 96
    %v300 = vpop.permute.xlu0 %299
    %301 = vrot.lane.b32.xlu0 %v284, 96
    %v302 = vpop.permute.xlu0 %301
    %303 = vrot.lane.b32.xlu0 %v285, 96
    %v304 = vpop.permute.xlu0 %303
    %305 = vrot.lane.b32.xlu0 %v286, 96
    %v306 = vpop.permute.xlu0 %305
    %307 = vrot.lane.b32.xlu0 %v287, 96
    %v308 = vpop.permute.xlu0 %307
    %309 = vrot.lane.b32.xlu0 %v288, 96
    %v310 = vpop.permute.xlu0 %309
    %311 = vrot.lane.b32.xlu0 %v289, 96
    %v312 = vpop.permute.xlu0 %311
    %313 = vrot.lane.b32.xlu0 %v290, 96
    %v314 = vpop.permute.xlu0 %313
    %vm323 = vcmask 917248
    %324 = vst.msk [vmem:[#allocation2] sm:$0xff] %vm323, %v300
    %325 = vst.msk [vmem:[#allocation2 + $0x10] sm:$0xff] %vm323, %v302
    %326 = vst.msk [vmem:[#allocation2 + $0x20] sm:$0xff] %vm323, %v304
    %327 = vst.msk [vmem:[#allocation2 + $0x30] sm:$0xff] %vm323, %v306
    %328 = vst.msk [vmem:[#allocation2 + $0x40] sm:$0xff] %vm323, %v308
    %329 = vst.msk [vmem:[#allocation2 + $0x50] sm:$0xff] %vm323, %v310
    %330 = vst.msk [vmem:[#allocation2 + $0x60] sm:$0xff] %vm323, %v312
    %331 = vst.msk [vmem:[#allocation2 + $0x70] sm:$0xff] %vm323, %v314
    %v332 = vld [vmem:[%s282 + $0x1] sm:$0xff]
    %v333 = vld [vmem:[%s282 + $0x11] sm:$0xff]
    %v334 = vld [vmem:[%s282 + $0x21] sm:$0xff]
    %v335 = vld [vmem:[%s282 + $0x31] sm:$0xff]
    %v336 = vld [vmem:[%s282 + $0x41] sm:$0xff]
    %v337 = vld [vmem:[%s282 + $0x51] sm:$0xff]
    %v338 = vld [vmem:[%s282 + $0x61] sm:$0xff]
    %v339 = vld [vmem:[%s282 + $0x71] sm:$0xff]
    %348 = vrot.lane.b32.xlu0 %v332, 112
    %v349 = vpop.permute.xlu0 %348
    %350 = vrot.lane.b32.xlu0 %v333, 112
    %v351 = vpop.permute.xlu0 %350
    %352 = vrot.lane.b32.xlu0 %v334, 112
    %v353 = vpop.permute.xlu0 %352
    %354 = vrot.lane.b32.xlu0 %v335, 112
    %v355 = vpop.permute.xlu0 %354
    %356 = vrot.lane.b32.xlu0 %v336, 112
    %v357 = vpop.permute.xlu0 %356
    %358 = vrot.lane.b32.xlu0 %v337, 112
    %v359 = vpop.permute.xlu0 %358
    %360 = vrot.lane.b32.xlu0 %v338, 112
    %v361 = vpop.permute.xlu0 %360
    %362 = vrot.lane.b32.xlu0 %v339, 112
    %v363 = vpop.permute.xlu0 %362
    %vm372 = vcmask 1048448
    %373 = vst.msk [vmem:[#allocation2] sm:$0xff] %vm372, %v349
    %374 = vst.msk [vmem:[#allocation2 + $0x10] sm:$0xff] %vm372, %v351
    %375 = vst.msk [vmem:[#allocation2 + $0x20] sm:$0xff] %vm372, %v353
    %376 = vst.msk [vmem:[#allocation2 + $0x30] sm:$0xff] %vm372, %v355
    %377 = vst.msk [vmem:[#allocation2 + $0x40] sm:$0xff] %vm372, %v357
    %378 = vst.msk [vmem:[#allocation2 + $0x50] sm:$0xff] %vm372, %v359
    %379 = vst.msk [vmem:[#allocation2 + $0x60] sm:$0xff] %vm372, %v361
    %380 = vst.msk [vmem:[#allocation2 + $0x70] sm:$0xff] %vm372, %v363
    %v381 = vld [vmem:[%s282 + $0x2] sm:$0xff]
    %v382 = vld [vmem:[%s282 + $0x12] sm:$0xff]
    %v383 = vld [vmem:[%s282 + $0x22] sm:$0xff]
    %v384 = vld [vmem:[%s282 + $0x32] sm:$0xff]
    %v385 = vld [vmem:[%s282 + $0x42] sm:$0xff]
    %v386 = vld [vmem:[%s282 + $0x52] sm:$0xff]
    %v387 = vld [vmem:[%s282 + $0x62] sm:$0xff]
    %v388 = vld [vmem:[%s282 + $0x72] sm:$0xff]
    %389 = vst.msk [vmem:[#allocation2 + $0x8] sm:$0xff] %vm23, %v381
    %390 = vst.msk [vmem:[#allocation2 + $0x18] sm:$0xff] %vm23, %v382
    %391 = vst.msk [vmem:[#allocation2 + $0x28] sm:$0xff] %vm23, %v383
    %392 = vst.msk [vmem:[#allocation2 + $0x38] sm:$0xff] %vm23, %v384
    %393 = vst.msk [vmem:[#allocation2 + $0x48] sm:$0xff] %vm23, %v385
    %394 = vst.msk [vmem:[#allocation2 + $0x58] sm:$0xff] %vm23, %v386
    %395 = vst.msk [vmem:[#allocation2 + $0x68] sm:$0xff] %vm23, %v387
    %396 = vst.msk [vmem:[#allocation2 + $0x78] sm:$0xff] %vm23, %v388
    %v397 = vld [vmem:[#allocation2] sm:$0xff]
    %v398 = vld [vmem:[#allocation2 + $0x8] sm:$0xff]
    %v399 = vld [vmem:[#allocation2 + $0x10] sm:$0xff]
    %v400 = vld [vmem:[#allocation2 + $0x18] sm:$0xff]
    %v401 = vld [vmem:[#allocation2 + $0x20] sm:$0xff]
    %v402 = vld [vmem:[#allocation2 + $0x28] sm:$0xff]
    %v403 = vld [vmem:[#allocation2 + $0x30] sm:$0xff]
    %v404 = vld [vmem:[#allocation2 + $0x38] sm:$0xff]
    %v405 = vld [vmem:[#allocation2 + $0x40] sm:$0xff]
    %v406 = vld [vmem:[#allocation2 + $0x48] sm:$0xff]
    %v407 = vld [vmem:[#allocation2 + $0x50] sm:$0xff]
    %v408 = vld [vmem:[#allocation2 + $0x58] sm:$0xff]
    %v409 = vld [vmem:[#allocation2 + $0x60] sm:$0xff]
    %v410 = vld [vmem:[#allocation2 + $0x68] sm:$0xff]
    %v411 = vld [vmem:[#allocation2 + $0x70] sm:$0xff]
    %v412 = vld [vmem:[#allocation2 + $0x78] sm:$0xff]
    %v413 = vld [vmem:[%s1] sm:$0xff]
    %v414 = vld [vmem:[%s1 + $0x8] sm:$0xff]
    %v415 = vld [vmem:[%s1 + $0x10] sm:$0xff]
    %v416 = vld [vmem:[%s1 + $0x18] sm:$0xff]
    %v417 = vld [vmem:[%s1 + $0x20] sm:$0xff]
    %v418 = vld [vmem:[%s1 + $0x28] sm:$0xff]
    %v419 = vld [vmem:[%s1 + $0x30] sm:$0xff]
    %v420 = vld [vmem:[%s1 + $0x38] sm:$0xff]
    %v421 = vld [vmem:[%s1 + $0x40] sm:$0xff]
    %v422 = vld [vmem:[%s1 + $0x48] sm:$0xff]
    %v423 = vld [vmem:[%s1 + $0x50] sm:$0xff]
    %v424 = vld [vmem:[%s1 + $0x58] sm:$0xff]
    %v425 = vld [vmem:[%s1 + $0x60] sm:$0xff]
    %v426 = vld [vmem:[%s1 + $0x68] sm:$0xff]
    %v427 = vld [vmem:[%s1 + $0x70] sm:$0xff]
    %v428 = vld [vmem:[%s1 + $0x78] sm:$0xff]
    %v429 = vld [vmem:[%s1 + $0x80] sm:$0xff]
    %v430 = vld [vmem:[%s1 + $0x88] sm:$0xff]
    %v432 = vsel %vm23, %v398, 0
    %v435 = vsel %vm23, %v400, 0
    %v438 = vsel %vm23, %v402, 0
    %v441 = vsel %vm23, %v404, 0
    %v444 = vsel %vm23, %v406, 0
    %v447 = vsel %vm23, %v408, 0
    %v450 = vsel %vm23, %v410, 0
    %v453 = vsel %vm23, %v412, 0
    %455 = vmatprep.subr.mxu0 0.0
    %456 = vmatpush1.msra.mxu0 %v428
    %457 = vmatprep.subr.mxu0 0.0
    %458 = vmatpush1.msra.mxu0 %v427
    %459 = vmatprep.subr.mxu0 0.0
    %460 = vmatpush1.msra.mxu0 %v426
    %461 = vmatprep.subr.mxu0 0.0
    %462 = vmatpush1.msra.mxu0 %v425
    %463 = vmatprep.subr.mxu0 0.0
    %464 = vmatpush1.msra.mxu0 %v424
    %465 = vmatprep.subr.mxu0 0.0
    %466 = vmatpush1.msra.mxu0 %v423
    %467 = vmatprep.subr.mxu0 0.0
    %468 = vmatpush1.msra.mxu0 %v422
    %469 = vmatprep.subr.mxu0 0.0
    %470 = vmatpush1.msra.mxu0 %v421
    %471 = vmatprep.subr.mxu0 0.0
    %472 = vmatpush1.msra.mxu0 %v420
    %473 = vmatprep.subr.mxu0 0.0
    %474 = vmatpush1.msra.mxu0 %v419
    %475 = vmatprep.subr.mxu0 0.0
    %476 = vmatpush1.msra.mxu0 %v418
    %477 = vmatprep.subr.mxu0 0.0
    %478 = vmatpush1.msra.mxu0 %v417
    %479 = vmatprep.subr.mxu0 0.0
    %480 = vmatpush1.msra.mxu0 %v416
    %481 = vmatprep.subr.mxu0 0.0
    %482 = vmatpush1.msra.mxu0 %v415
    %483 = vmatprep.subr.mxu0 0.0
    %484 = vmatpush1.msra.mxu0 %v414
    %485 = vmatprep.subr.mxu0 0.0
    %486 = vmatpush1.msra.mxu0 %v413
    %487 = vmatprep.subr.mxu0 0.0
    %488 = vmatpush2.msra.mxu0 0.0
    %489 = vmatprep.subr.mxu0 0.0
    %490 = vmatpush2.msra.mxu0 0.0
    %491 = vmatprep.subr.mxu0 0.0
    %492 = vmatpush2.msra.mxu0 0.0
    %493 = vmatprep.subr.mxu0 0.0
    %494 = vmatpush2.msra.mxu0 0.0
    %495 = vmatprep.subr.mxu0 0.0
    %496 = vmatpush2.msra.mxu0 0.0
    %497 = vmatprep.subr.mxu0 0.0
    %498 = vmatpush2.msra.mxu0 0.0
    %499 = vmatprep.subr.mxu0 0.0
    %500 = vmatpush2.msra.mxu0 0.0
    %501 = vmatprep.subr.mxu0 0.0
    %502 = vmatpush2.msra.mxu0 0.0
    %503 = vmatprep.subr.mxu0 0.0
    %504 = vmatpush2.msra.mxu0 0.0
    %505 = vmatprep.subr.mxu0 0.0
    %506 = vmatpush2.msra.mxu0 0.0
    %507 = vmatprep.subr.mxu0 0.0
    %508 = vmatpush2.msra.mxu0 0.0
    %509 = vmatprep.subr.mxu0 0.0
    %510 = vmatpush2.msra.mxu0 0.0
    %511 = vmatprep.subr.mxu0 0.0
    %512 = vmatpush2.msra.mxu0 0.0
    %513 = vmatprep.subr.mxu0 0.0
    %514 = vmatpush2.msra.mxu0 0.0
    %515 = vmatprep.subr.mxu0 0.0
    %516 = vmatpush2.msra.mxu0 %v430
    %517 = vmatprep.subr.mxu0 0.0
    %518 = vmatpush2.msra.mxu0 %v429
    %519 = vmatprep.mubr.f32.mxu0 %v432
    %520 = vmatmul.mubr.f32.gmra.mxu0 %v397
    %v521 = vpop.f32.mrf.mxu0
    %v522 = vadd.f32 0.0, %v521
    %v523 = vpop.f32.mrf.mxu0
    %524 = vmatprep.mubr.f32.mxu0 %v435
    %525 = vmatmul.mubr.f32.gmra.mxu0 %v399
    %v526 = vpop.f32.mrf.mxu0
    %v527 = vadd.f32 0.0, %v526
    %v528 = vpop.f32.mrf.mxu0
    %529 = vmatprep.mubr.f32.mxu0 %v438
    %530 = vmatmul.mubr.f32.gmra.mxu0 %v401
    %v531 = vpop.f32.mrf.mxu0
    %v532 = vadd.f32 0.0, %v531
    %v533 = vpop.f32.mrf.mxu0
    %534 = vmatprep.mubr.f32.mxu0 %v441
    %535 = vmatmul.mubr.f32.gmra.mxu0 %v403
    %v536 = vpop.f32.mrf.mxu0
    %v537 = vadd.f32 0.0, %v536
    %v538 = vpop.f32.mrf.mxu0
    %539 = vmatprep.mubr.f32.mxu0 %v444
    %540 = vmatmul.mubr.f32.gmra.mxu0 %v405
    %v541 = vpop.f32.mrf.mxu0
    %v542 = vadd.f32 0.0, %v541
    %v543 = vpop.f32.mrf.mxu0
    %544 = vmatprep.mubr.f32.mxu0 %v447
    %545 = vmatmul.mubr.f32.gmra.mxu0 %v407
    %v546 = vpop.f32.mrf.mxu0
    %v547 = vadd.f32 0.0, %v546
    %v548 = vpop.f32.mrf.mxu0
    %549 = vmatprep.mubr.f32.mxu0 %v450
    %550 = vmatmul.mubr.f32.gmra.mxu0 %v409
    %v551 = vpop.f32.mrf.mxu0
    %v552 = vadd.f32 0.0, %v551
    %v553 = vpop.f32.mrf.mxu0
    %554 = vmatprep.mubr.f32.mxu0 %v453
    %555 = vmatmul.mubr.f32.gmra.mxu0 %v411
    %v556 = vpop.f32.mrf.mxu0
    %v557 = vadd.f32 0.0, %v556
    %v558 = vpop.f32.mrf.mxu0
    %559 = vdwg.mxu0
    %vm560 = vcmask 261120
    %561 = vst.msk [vmem:[#allocation3] sm:$0xff] %vm560, %v522
    %562 = vst.msk [vmem:[#allocation3 + $0x8] sm:$0xff] %vm560, %v527
    %563 = vst.msk [vmem:[#allocation3 + $0x10] sm:$0xff] %vm560, %v532
    %564 = vst.msk [vmem:[#allocation3 + $0x18] sm:$0xff] %vm560, %v537
    %565 = vst.msk [vmem:[#allocation3 + $0x20] sm:$0xff] %vm560, %v542
    %566 = vst.msk [vmem:[#allocation3 + $0x28] sm:$0xff] %vm560, %v547
    %567 = vst.msk [vmem:[#allocation3 + $0x30] sm:$0xff] %vm560, %v552
    %568 = vst.msk [vmem:[#allocation3 + $0x38] sm:$0xff] %vm560, %v557
    // Predicated region
    $region10: #{tpu_custom_call.1} parent=1 // pred_check
      _
    $region11: #{tpu_custom_call.1} parent=1 // pred_check_branch
      %570 = sbr.rel (0) target = $region13
    $region12: #{tpu_custom_call.1} parent=1 // pred_region
      %s572 = ssub.s32 1024, 1024
      %573 = vsyncadd [#allocation4], %s572
      %s574 = sshll.u32 [#allocation3], 4
      %s575 = int_to_ptr.vmem [resolvable:$true] %s574
      %580 = dma.vmem_to_hbm [thread:$0]  %s575, 1024, %s2, [#allocation4], 128, 128, 8
    $region13: #{tpu_custom_call.1} parent=1 // pred_fallthru
      _
    // Predicated region
    $region14: #{tpu_custom_call.1} parent=1 // pred_check
      _
    $region15: #{tpu_custom_call.1} parent=1 // pred_check_branch
      %582 = sbr.rel (0) target = $region17
    $region16: #{tpu_custom_call.1} parent=1 // pred_region
      %583 = dma.done [#allocation4], 1024
    $region17: #{tpu_custom_call.1} parent=1 // pred_fallthru
      _
    %584 = vsyncpa [#allocation4], 1

</llo_original>
